<compile_context>
chip_gen: v7x
topology: tpu7x:2x2x1
jax: 0.10.0
libtpu: 0.0.40
codegen_flags: <defaults>
</compile_context>

<pallas_src>
import numpy as np
import jax
import jax.numpy as jnp
from jax import lax
from jax.experimental import pallas as pl
from jax.experimental.pallas import tpu as pltpu

KH = KW = 3  # 3x3 conv, padding=1, stride=1


def _conv_relu_kernel(x_ref, w_ref, b_ref, o_ref, lhs_ref):
    # x_ref  : (B, Cin, H, W)          raw NCHW activation tile
    # w_ref  : (3*Cin*W, Cout*W)       fused block-Toeplitz conv weight (resident)
    # b_ref  : (1, Cout*W)             bias, channel-major lane blocks (resident)
    # o_ref  : (B, Cout, H, W)         raw NCHW output tile
    # lhs_ref: (B*H, 3*Cin*W)          VMEM scratch: fused-K matmul LHS
    B, Cin, H, W = x_ref.shape
    Cout = o_ref.shape[1]
    CinW = Cin * W

    zrow = jnp.zeros((1, CinW), dtype=lhs_ref.dtype)

    # Assemble the fused-K LHS with per-channel slab copies (static offsets).
    # lhs[b*H + h, kh*CinW + ci*W + wi] = x[b, ci, h + kh - 1, wi]  (0 outside H)
    for b in range(B):
        r0 = b * H
        # H-halo rows (zero padding along H) for the kh=0 / kh=2 blocks.
        lhs_ref[r0:r0 + 1, 0:CinW] = zrow
        lhs_ref[r0 + H - 1:r0 + H, 2 * CinW:3 * CinW] = zrow
        for ci in range(Cin):
            col = ci * W
            xs = x_ref[b, ci]                                   # (H, W)
            # kh = 1 (center tap row): aligned rows.
            lhs_ref[r0:r0 + H, CinW + col:CinW + col + W] = xs
            # kh = 0 (reads input row h-1): shift down one row.
            lhs_ref[r0 + 1:r0 + H, col:col + W] = xs[0:H - 1, :]
            # kh = 2 (reads input row h+1): shift up one row.
            lhs_ref[r0:r0 + H - 1, 2 * CinW + col:2 * CinW + col + W] = xs[1:H, :]

    # One fused MXU matmul for every row of every image in this step,
    # accumulated in f32:  (B*H, 3*Cin*W) @ (3*Cin*W, Cout*W).
    acc = jnp.dot(lhs_ref[...], w_ref[...], preferred_element_type=jnp.float32)
    res = jnp.maximum(acc + b_ref[...], 0.0).astype(o_ref.dtype)

    # Scatter the channel-major lane blocks straight back to NCHW output.
    for b in range(B):
        for co in range(Cout):
            o_ref[b, co, :, :] = res[b * H:(b + 1) * H, co * W:(co + 1) * W]


def pack_conv_params(w_oihw, bias, width):
    """Pack PyTorch OIHW conv weights into the fused block-Toeplitz layout:

        T[kh*Cin*W + ci*W + wi, co*W + wo] = w[co, ci, kh, wi - wo + 1]
        (zero when wi - wo + 1 is outside [0, 3) -> encodes padding=1 along W)

    Bias is repeated per output column block: b_row[co*W + wo] = bias[co].
    Done once at model-build time, not per forward."""
    w_np = np.asarray(w_oihw, dtype=np.float32)
    Cout, Cin, kh_n, kw_n = w_np.shape
    Wd = width
    T = np.zeros((kh_n * Cin * Wd, Cout * Wd), np.float32)
    for kh in range(kh_n):
        for kw in range(kw_n):
            tap = w_np[:, :, kh, kw]                      # (Cout, Cin)
            for wo in range(Wd):
                wi = wo + kw - 1                          # input column of this tap
                if 0 <= wi < Wd:                          # else stays zero (W padding)
                    rows = kh * Cin * Wd + np.arange(Cin) * Wd + wi
                    cols = np.arange(Cout) * Wd + wo
                    T[np.ix_(rows, cols)] = tap.T         # (Cin, Cout)
    b_row = np.repeat(np.asarray(bias, np.float32), Wd).reshape(1, Cout * Wd)
    return jnp.asarray(T), jnp.asarray(b_row)


@jax.jit
def block_forward(x_nchw, w_packed, b_row):
    """Block.forward: Conv2d(3x3, padding=1, bias=True) + ReLU, NCHW in/out."""
    N, Cin, H, W = x_nchw.shape
    WCout = b_row.shape[-1]
    Cout = WCout // W
    K = w_packed.shape[0]                       # 3 * Cin * W

    # At most two fat grid steps: feeds both v7x TensorCores; on single-core
    # v5e/v6e the second step costs one extra ~0.35us, negligible per step.
    steps = 2 if (N >= 2 and N % 2 == 0) else 1
    B = N // steps                              # images per grid step

    return pl.pallas_call(
        _conv_relu_kernel,
        out_shape=jax.ShapeDtypeStruct((N, Cout, H, W), x_nchw.dtype),
        grid_spec=pltpu.PrefetchScalarGridSpec(
            num_scalar_prefetch=0,
            grid=(steps,),
            in_specs=[
                pl.BlockSpec((B, Cin, H, W), lambda n: (n, 0, 0, 0)),
                # constant block index -> weights/bias stay resident in VMEM
                pl.BlockSpec((K, WCout), lambda n: (0, 0)),
                pl.BlockSpec((1, WCout), lambda n: (0, 0)),
            ],
            out_specs=pl.BlockSpec((B, Cout, H, W), lambda n: (n, 0, 0, 0)),
            scratch_shapes=[pltpu.VMEM((B * H, K), x_nchw.dtype)],
        ),
        compiler_params=pltpu.CompilerParams(
            dimension_semantics=("parallel",)),
    )(x_nchw, w_packed, b_row)


if __name__ == "__main__":
    key = jax.random.PRNGKey(0)
    k_x, k_w, k_b = jax.random.split(key, 3)

    N, Cin, H, W = 2, 4, 16, 16
    Cout = 8

    x = jax.random.normal(k_x, (N, Cin, H, W), dtype=jnp.float32)
    # Deterministic synthetic parameters (PyTorch Conv2d weight is OIHW).
    w = 0.1 * jax.random.normal(k_w, (Cout, Cin, KH, KW), dtype=jnp.float32)
    b = 0.1 * jax.random.normal(k_b, (Cout,), dtype=jnp.float32)

    w_packed, b_row = pack_conv_params(w, b, W)

    out = jax.block_until_ready(block_forward(x, w_packed, b_row))

    # Reference: plain-JAX SAME conv + bias + ReLU on NCHW (module semantics).
    ref = lax.conv_general_dilated(
        x, w, window_strides=(1, 1), padding="SAME",
        dimension_numbers=("NCHW", "OIHW", "NCHW"))
    ref = jnp.maximum(ref + b[None, :, None, None], 0.0)

    assert out.shape == (N, Cout, H, W), out.shape
    max_err = float(jnp.max(jnp.abs(out - ref)))
    assert jnp.allclose(out, ref, atol=1e-4, rtol=1e-4), max_err

    print("KERNEL_OK")
</pallas_src>

<mosaic_0001>
module attributes {stable_mosaic.version = 11 : i64} {
  func.func @_conv_relu_kernel(%arg0: i32, %arg1: memref<1x4x16x16xf32, #tpu.memory_space<vmem>>, %arg2: memref<192x128xf32, #tpu.memory_space<vmem>>, %arg3: memref<1x128xf32, #tpu.memory_space<vmem>>, %arg4: memref<1x8x16x16xf32, #tpu.memory_space<vmem>>, %arg5: memref<16x192xf32, #tpu.memory_space<vmem>>) attributes {dimension_semantics = [#tpu.dimension_semantics<parallel>], iteration_bounds = array<i64: 2>, scalar_prefetch = 0 : i64, scratch_operands = 1 : i64, tpu.core_type = #tpu.core_type<tc>, window_params = [{transform_indices = @transform_0, window_bounds = array<i64: 1, 4, 16, 16>}, {pipeline_mode = #tpu.pipeline_mode<synchronous>, transform_indices = @transform_1, window_bounds = array<i64: 192, 128>}, {pipeline_mode = #tpu.pipeline_mode<synchronous>, transform_indices = @transform_2, window_bounds = array<i64: 1, 128>}, {transform_indices = @transform_3, window_bounds = array<i64: 1, 8, 16, 16>}]} {
    %cst = arith.constant 0.000000e+00 : f32
    %0 = vector.broadcast %cst : f32 to vector<1x64xf32>
    %c0 = arith.constant 0 : index
    %c0_0 = arith.constant 0 : index
    %1 = vector.load %arg5[%c0, %c0_0] : memref<16x192xf32, #tpu.memory_space<vmem>>, vector<1x64xf32>
    tpu.vector_store %arg5[%c0, %c0_0], %0 {strides = array<i32>} : memref<16x192xf32, #tpu.memory_space<vmem>>, vector<1x64xf32>,
    %c15 = arith.constant 15 : index
    %c128 = arith.constant 128 : index
    %2 = vector.load %arg5[%c15, %c128] : memref<16x192xf32, #tpu.memory_space<vmem>>, vector<1x64xf32>
    tpu.vector_store %arg5[%c15, %c128], %0 {strides = array<i32>} : memref<16x192xf32, #tpu.memory_space<vmem>>, vector<1x64xf32>,
    %c0_1 = arith.constant 0 : index
    %c0_2 = arith.constant 0 : index
    %c0_3 = arith.constant 0 : index
    %c0_4 = arith.constant 0 : index
    %3 = vector.load %arg1[%c0_1, %c0_2, %c0_3, %c0_4] : memref<1x4x16x16xf32, #tpu.memory_space<vmem>>, vector<1x1x16x16xf32>
    %4 = vector.shape_cast %3 : vector<1x1x16x16xf32> to vector<16x16xf32>
    %c0_5 = arith.constant 0 : index
    %c64 = arith.constant 64 : index
    %5 = vector.load %arg5[%c0_5, %c64] : memref<16x192xf32, #tpu.memory_space<vmem>>, vector<16x16xf32>
    tpu.vector_store %arg5[%c0_5, %c64], %4 {strides = array<i32>} : memref<16x192xf32, #tpu.memory_space<vmem>>, vector<16x16xf32>,
    %6 = vector.extract_strided_slice %4 {offsets = [0, 0], sizes = [15, 16], strides = [1, 1]} : vector<16x16xf32> to vector<15x16xf32>
    %c1 = arith.constant 1 : index
    %c0_6 = arith.constant 0 : index
    %7 = vector.load %arg5[%c1, %c0_6] : memref<16x192xf32, #tpu.memory_space<vmem>>, vector<15x16xf32>
    tpu.vector_store %arg5[%c1, %c0_6], %6 {strides = array<i32>} : memref<16x192xf32, #tpu.memory_space<vmem>>, vector<15x16xf32>,
    %8 = vector.extract_strided_slice %4 {offsets = [1, 0], sizes = [15, 16], strides = [1, 1]} : vector<16x16xf32> to vector<15x16xf32>
    %c0_7 = arith.constant 0 : index
    %c128_8 = arith.constant 128 : index
    %9 = vector.load %arg5[%c0_7, %c128_8] : memref<16x192xf32, #tpu.memory_space<vmem>>, vector<15x16xf32>
    tpu.vector_store %arg5[%c0_7, %c128_8], %8 {strides = array<i32>} : memref<16x192xf32, #tpu.memory_space<vmem>>, vector<15x16xf32>,
    %c0_9 = arith.constant 0 : index
    %c1_10 = arith.constant 1 : index
    %c0_11 = arith.constant 0 : index
    %c0_12 = arith.constant 0 : index
    %10 = vector.load %arg1[%c0_9, %c1_10, %c0_11, %c0_12] : memref<1x4x16x16xf32, #tpu.memory_space<vmem>>, vector<1x1x16x16xf32>
    %11 = vector.shape_cast %10 : vector<1x1x16x16xf32> to vector<16x16xf32>
    %c0_13 = arith.constant 0 : index
    %c80 = arith.constant 80 : index
    %12 = vector.load %arg5[%c0_13, %c80] : memref<16x192xf32, #tpu.memory_space<vmem>>, vector<16x16xf32>
    tpu.vector_store %arg5[%c0_13, %c80], %11 {strides = array<i32>} : memref<16x192xf32, #tpu.memory_space<vmem>>, vector<16x16xf32>,
    %13 = vector.extract_strided_slice %11 {offsets = [0, 0], sizes = [15, 16], strides = [1, 1]} : vector<16x16xf32> to vector<15x16xf32>
    %c1_14 = arith.constant 1 : index
    %c16 = arith.constant 16 : index
    %14 = vector.load %arg5[%c1_14, %c16] : memref<16x192xf32, #tpu.memory_space<vmem>>, vector<15x16xf32>
    tpu.vector_store %arg5[%c1_14, %c16], %13 {strides = array<i32>} : memref<16x192xf32, #tpu.memory_space<vmem>>, vector<15x16xf32>,
    %15 = vector.extract_strided_slice %11 {offsets = [1, 0], sizes = [15, 16], strides = [1, 1]} : vector<16x16xf32> to vector<15x16xf32>
    %c0_15 = arith.constant 0 : index
    %c144 = arith.constant 144 : index
    %16 = vector.load %arg5[%c0_15, %c144] : memref<16x192xf32, #tpu.memory_space<vmem>>, vector<15x16xf32>
    tpu.vector_store %arg5[%c0_15, %c144], %15 {strides = array<i32>} : memref<16x192xf32, #tpu.memory_space<vmem>>, vector<15x16xf32>,
    %c0_16 = arith.constant 0 : index
    %c2 = arith.constant 2 : index
    %c0_17 = arith.constant 0 : index
    %c0_18 = arith.constant 0 : index
    %17 = vector.load %arg1[%c0_16, %c2, %c0_17, %c0_18] : memref<1x4x16x16xf32, #tpu.memory_space<vmem>>, vector<1x1x16x16xf32>
    %18 = vector.shape_cast %17 : vector<1x1x16x16xf32> to vector<16x16xf32>
    %c0_19 = arith.constant 0 : index
    %c96 = arith.constant 96 : index
    %19 = vector.load %arg5[%c0_19, %c96] : memref<16x192xf32, #tpu.memory_space<vmem>>, vector<16x16xf32>
    tpu.vector_store %arg5[%c0_19, %c96], %18 {strides = array<i32>} : memref<16x192xf32, #tpu.memory_space<vmem>>, vector<16x16xf32>,
    %20 = vector.extract_strided_slice %18 {offsets = [0, 0], sizes = [15, 16], strides = [1, 1]} : vector<16x16xf32> to vector<15x16xf32>
    %c1_20 = arith.constant 1 : index
    %c32 = arith.constant 32 : index
    %21 = vector.load %arg5[%c1_20, %c32] : memref<16x192xf32, #tpu.memory_space<vmem>>, vector<15x16xf32>
    tpu.vector_store %arg5[%c1_20, %c32], %20 {strides = array<i32>} : memref<16x192xf32, #tpu.memory_space<vmem>>, vector<15x16xf32>,
    %22 = vector.extract_strided_slice %18 {offsets = [1, 0], sizes = [15, 16], strides = [1, 1]} : vector<16x16xf32> to vector<15x16xf32>
    %c0_21 = arith.constant 0 : index
    %c160 = arith.constant 160 : index
    %23 = vector.load %arg5[%c0_21, %c160] : memref<16x192xf32, #tpu.memory_space<vmem>>, vector<15x16xf32>
    tpu.vector_store %arg5[%c0_21, %c160], %22 {strides = array<i32>} : memref<16x192xf32, #tpu.memory_space<vmem>>, vector<15x16xf32>,
    %c0_22 = arith.constant 0 : index
    %c3 = arith.constant 3 : index
    %c0_23 = arith.constant 0 : index
    %c0_24 = arith.constant 0 : index
    %24 = vector.load %arg1[%c0_22, %c3, %c0_23, %c0_24] : memref<1x4x16x16xf32, #tpu.memory_space<vmem>>, vector<1x1x16x16xf32>
    %25 = vector.shape_cast %24 : vector<1x1x16x16xf32> to vector<16x16xf32>
    %c0_25 = arith.constant 0 : index
    %c112 = arith.constant 112 : index
    %26 = vector.load %arg5[%c0_25, %c112] : memref<16x192xf32, #tpu.memory_space<vmem>>, vector<16x16xf32>
    tpu.vector_store %arg5[%c0_25, %c112], %25 {strides = array<i32>} : memref<16x192xf32, #tpu.memory_space<vmem>>, vector<16x16xf32>,
    %27 = vector.extract_strided_slice %25 {offsets = [0, 0], sizes = [15, 16], strides = [1, 1]} : vector<16x16xf32> to vector<15x16xf32>
    %c1_26 = arith.constant 1 : index
    %c48 = arith.constant 48 : index
    %28 = vector.load %arg5[%c1_26, %c48] : memref<16x192xf32, #tpu.memory_space<vmem>>, vector<15x16xf32>
    tpu.vector_store %arg5[%c1_26, %c48], %27 {strides = array<i32>} : memref<16x192xf32, #tpu.memory_space<vmem>>, vector<15x16xf32>,
    %29 = vector.extract_strided_slice %25 {offsets = [1, 0], sizes = [15, 16], strides = [1, 1]} : vector<16x16xf32> to vector<15x16xf32>
    %c0_27 = arith.constant 0 : index
    %c176 = arith.constant 176 : index
    %30 = vector.load %arg5[%c0_27, %c176] : memref<16x192xf32, #tpu.memory_space<vmem>>, vector<15x16xf32>
    tpu.vector_store %arg5[%c0_27, %c176], %29 {strides = array<i32>} : memref<16x192xf32, #tpu.memory_space<vmem>>, vector<15x16xf32>,
    %c0_28 = arith.constant 0 : index
    %c0_29 = arith.constant 0 : index
    %31 = vector.load %arg5[%c0_28, %c0_29] : memref<16x192xf32, #tpu.memory_space<vmem>>, vector<16x192xf32>
    %c0_30 = arith.constant 0 : index
    %c0_31 = arith.constant 0 : index
    %32 = vector.load %arg2[%c0_30, %c0_31] : memref<192x128xf32, #tpu.memory_space<vmem>>, vector<192x128xf32>
    %cst_32 = arith.constant dense<0.000000e+00> : vector<16x128xf32>
    %33 = tpu.matmul %31, %32, %cst_32 {dimension_numbers = #tpu.dot_dimension_numbers<[1], [0], [0], [1], [0, 0, 1, 1], [], []>} : vector<16x192xf32>, vector<192x128xf32>, vector<16x128xf32> -> vector<16x128xf32>
    %c0_33 = arith.constant 0 : index
    %c0_34 = arith.constant 0 : index
    %34 = vector.load %arg3[%c0_33, %c0_34] : memref<1x128xf32, #tpu.memory_space<vmem>>, vector<1x128xf32>
    %35 = vector.broadcast %34 : vector<1x128xf32> to vector<16x128xf32>
    %36 = arith.addf %33, %35 : vector<16x128xf32>
    %cst_35 = arith.constant 0.000000e+00 : f32
    %37 = vector.broadcast %cst_35 : f32 to vector<16x128xf32>
    %38 = arith.maximumf %36, %37 : vector<16x128xf32>
    %39 = vector.extract_strided_slice %38 {offsets = [0, 0], sizes = [16, 16], strides = [1, 1]} : vector<16x128xf32> to vector<16x16xf32>
    %c0_36 = arith.constant 0 : index
    %c0_37 = arith.constant 0 : index
    %c0_38 = arith.constant 0 : index
    %c0_39 = arith.constant 0 : index
    %40 = vector.load %arg4[%c0_36, %c0_37, %c0_38, %c0_39] : memref<1x8x16x16xf32, #tpu.memory_space<vmem>>, vector<1x1x16x16xf32>
    %41 = vector.shape_cast %40 : vector<1x1x16x16xf32> to vector<16x16xf32>
    %42 = vector.shape_cast %39 : vector<16x16xf32> to vector<1x1x16x16xf32>
    tpu.vector_store %arg4[%c0_36, %c0_37, %c0_38, %c0_39], %42 {strides = array<i32>} : memref<1x8x16x16xf32, #tpu.memory_space<vmem>>, vector<1x1x16x16xf32>,
    %43 = vector.extract_strided_slice %38 {offsets = [0, 16], sizes = [16, 16], strides = [1, 1]} : vector<16x128xf32> to vector<16x16xf32>
    %c0_40 = arith.constant 0 : index
    %c1_41 = arith.constant 1 : index
    %c0_42 = arith.constant 0 : index
    %c0_43 = arith.constant 0 : index
    %44 = vector.load %arg4[%c0_40, %c1_41, %c0_42, %c0_43] : memref<1x8x16x16xf32, #tpu.memory_space<vmem>>, vector<1x1x16x16xf32>
    %45 = vector.shape_cast %44 : vector<1x1x16x16xf32> to vector<16x16xf32>
    %46 = vector.shape_cast %43 : vector<16x16xf32> to vector<1x1x16x16xf32>
    tpu.vector_store %arg4[%c0_40, %c1_41, %c0_42, %c0_43], %46 {strides = array<i32>} : memref<1x8x16x16xf32, #tpu.memory_space<vmem>>, vector<1x1x16x16xf32>,
    %47 = vector.extract_strided_slice %38 {offsets = [0, 32], sizes = [16, 16], strides = [1, 1]} : vector<16x128xf32> to vector<16x16xf32>
    %c0_44 = arith.constant 0 : index
    %c2_45 = arith.constant 2 : index
    %c0_46 = arith.constant 0 : index
    %c0_47 = arith.constant 0 : index
    %48 = vector.load %arg4[%c0_44, %c2_45, %c0_46, %c0_47] : memref<1x8x16x16xf32, #tpu.memory_space<vmem>>, vector<1x1x16x16xf32>
    %49 = vector.shape_cast %48 : vector<1x1x16x16xf32> to vector<16x16xf32>
    %50 = vector.shape_cast %47 : vector<16x16xf32> to vector<1x1x16x16xf32>
    tpu.vector_store %arg4[%c0_44, %c2_45, %c0_46, %c0_47], %50 {strides = array<i32>} : memref<1x8x16x16xf32, #tpu.memory_space<vmem>>, vector<1x1x16x16xf32>,
    %51 = vector.extract_strided_slice %38 {offsets = [0, 48], sizes = [16, 16], strides = [1, 1]} : vector<16x128xf32> to vector<16x16xf32>
    %c0_48 = arith.constant 0 : index
    %c3_49 = arith.constant 3 : index
    %c0_50 = arith.constant 0 : index
    %c0_51 = arith.constant 0 : index
    %52 = vector.load %arg4[%c0_48, %c3_49, %c0_50, %c0_51] : memref<1x8x16x16xf32, #tpu.memory_space<vmem>>, vector<1x1x16x16xf32>
    %53 = vector.shape_cast %52 : vector<1x1x16x16xf32> to vector<16x16xf32>
    %54 = vector.shape_cast %51 : vector<16x16xf32> to vector<1x1x16x16xf32>
    tpu.vector_store %arg4[%c0_48, %c3_49, %c0_50, %c0_51], %54 {strides = array<i32>} : memref<1x8x16x16xf32, #tpu.memory_space<vmem>>, vector<1x1x16x16xf32>,
    %55 = vector.extract_strided_slice %38 {offsets = [0, 64], sizes = [16, 16], strides = [1, 1]} : vector<16x128xf32> to vector<16x16xf32>
    %c0_52 = arith.constant 0 : index
    %c4 = arith.constant 4 : index
    %c0_53 = arith.constant 0 : index
    %c0_54 = arith.constant 0 : index
    %56 = vector.load %arg4[%c0_52, %c4, %c0_53, %c0_54] : memref<1x8x16x16xf32, #tpu.memory_space<vmem>>, vector<1x1x16x16xf32>
    %57 = vector.shape_cast %56 : vector<1x1x16x16xf32> to vector<16x16xf32>
    %58 = vector.shape_cast %55 : vector<16x16xf32> to vector<1x1x16x16xf32>
    tpu.vector_store %arg4[%c0_52, %c4, %c0_53, %c0_54], %58 {strides = array<i32>} : memref<1x8x16x16xf32, #tpu.memory_space<vmem>>, vector<1x1x16x16xf32>,
    %59 = vector.extract_strided_slice %38 {offsets = [0, 80], sizes = [16, 16], strides = [1, 1]} : vector<16x128xf32> to vector<16x16xf32>
    %c0_55 = arith.constant 0 : index
    %c5 = arith.constant 5 : index
    %c0_56 = arith.constant 0 : index
    %c0_57 = arith.constant 0 : index
    %60 = vector.load %arg4[%c0_55, %c5, %c0_56, %c0_57] : memref<1x8x16x16xf32, #tpu.memory_space<vmem>>, vector<1x1x16x16xf32>
    %61 = vector.shape_cast %60 : vector<1x1x16x16xf32> to vector<16x16xf32>
    %62 = vector.shape_cast %59 : vector<16x16xf32> to vector<1x1x16x16xf32>
    tpu.vector_store %arg4[%c0_55, %c5, %c0_56, %c0_57], %62 {strides = array<i32>} : memref<1x8x16x16xf32, #tpu.memory_space<vmem>>, vector<1x1x16x16xf32>,
    %63 = vector.extract_strided_slice %38 {offsets = [0, 96], sizes = [16, 16], strides = [1, 1]} : vector<16x128xf32> to vector<16x16xf32>
    %c0_58 = arith.constant 0 : index
    %c6 = arith.constant 6 : index
    %c0_59 = arith.constant 0 : index
    %c0_60 = arith.constant 0 : index
    %64 = vector.load %arg4[%c0_58, %c6, %c0_59, %c0_60] : memref<1x8x16x16xf32, #tpu.memory_space<vmem>>, vector<1x1x16x16xf32>
    %65 = vector.shape_cast %64 : vector<1x1x16x16xf32> to vector<16x16xf32>
    %66 = vector.shape_cast %63 : vector<16x16xf32> to vector<1x1x16x16xf32>
    tpu.vector_store %arg4[%c0_58, %c6, %c0_59, %c0_60], %66 {strides = array<i32>} : memref<1x8x16x16xf32, #tpu.memory_space<vmem>>, vector<1x1x16x16xf32>,
    %67 = vector.extract_strided_slice %38 {offsets = [0, 112], sizes = [16, 16], strides = [1, 1]} : vector<16x128xf32> to vector<16x16xf32>
    %c0_61 = arith.constant 0 : index
    %c7 = arith.constant 7 : index
    %c0_62 = arith.constant 0 : index
    %c0_63 = arith.constant 0 : index
    %68 = vector.load %arg4[%c0_61, %c7, %c0_62, %c0_63] : memref<1x8x16x16xf32, #tpu.memory_space<vmem>>, vector<1x1x16x16xf32>
    %69 = vector.shape_cast %68 : vector<1x1x16x16xf32> to vector<16x16xf32>
    %70 = vector.shape_cast %67 : vector<16x16xf32> to vector<1x1x16x16xf32>
    tpu.vector_store %arg4[%c0_61, %c7, %c0_62, %c0_63], %70 {strides = array<i32>} : memref<1x8x16x16xf32, #tpu.memory_space<vmem>>, vector<1x1x16x16xf32>,
    return
  }
  func.func @transform_0(%arg0: i32) -> (i32, i32, i32, i32) {
    %c0_i32 = arith.constant 0 : i32
    %c0_i32_0 = arith.constant 0 : i32
    %c0_i32_1 = arith.constant 0 : i32
    %c0_i32_2 = arith.constant 0 : i32
    return %arg0, %c0_i32, %c0_i32_0, %c0_i32_1 : i32, i32, i32, i32
  }
  func.func @transform_1(%arg0: i32) -> (i32, i32) {
    %c0_i32 = arith.constant 0 : i32
    %c0_i32_0 = arith.constant 0 : i32
    %c0_i32_1 = arith.constant 0 : i32
    return %c0_i32, %c0_i32_0 : i32, i32
  }
  func.func @transform_2(%arg0: i32) -> (i32, i32) {
    %c0_i32 = arith.constant 0 : i32
    %c0_i32_0 = arith.constant 0 : i32
    %c0_i32_1 = arith.constant 0 : i32
    return %c0_i32, %c0_i32_0 : i32, i32
  }
  func.func @transform_3(%arg0: i32) -> (i32, i32, i32, i32) {
    %c0_i32 = arith.constant 0 : i32
    %c0_i32_0 = arith.constant 0 : i32
    %c0_i32_1 = arith.constant 0 : i32
    %c0_i32_2 = arith.constant 0 : i32
    return %arg0, %c0_i32, %c0_i32_0, %c0_i32_1 : i32, i32, i32, i32
  }
}

</mosaic_0001>

<llo_original>
// kernel: block_forward.1
$region0: #{block_forward.1}
  #allocation0 [shape = 'u32[]', space=smem, size = 0x4, offset = 0x4, fixed_abs, tag = 'smem constant byte address 0x4 - core index']
  #allocation1 [shape = 'u32[144,128]{1,0:T(1,128)}', space=vmem, size = 0x12000, scoped, tag = 'internal scratch']
  #allocation2 [shape = 'f32[16,192]{1,0:T(8,128)}', space=vmem, size = 0x4000, scoped, tag = 'scratch operand']
  %s0 = inlined_call_operand.hbm [shape: f32[2,4,16,16], index: 0, kind: input, shape index: {}]
  %s1 = inlined_call_operand.hbm [shape: f32[192,128], index: 1, kind: input, shape index: {}]
  %s2 = inlined_call_operand.vmem [shape: f32[1,128], index: 2, kind: input, shape index: {}]
  %s3 = inlined_call_operand.hbm [shape: f32[2,8,16,16], index: 3, kind: output, shape index: {}]
  %s4 = sld [smem:[#allocation0]]
  $region53: #{block_forward.1} parent=0
    _
  %s6 = ssub.s32 1, %s4
  %s7 = scalar_select 0, %s6, %s4
  $region1: #{block_forward.1} parent=0
    #allocation3 [shape = 'u8[65536]{0}', space=vmem, size = 0x10000, scoped, tag = 'input window, operand 0']
    #allocation4 [shape = 's32[2]{0}', space=sflag, size = 0x8, scoped, tag = 'scoped memory for block_forward.1']
    #allocation5 [shape = 's32[2]{0}', space=sflag, size = 0x8, scoped, tag = 'scoped memory for block_forward.1']
    #allocation6 [shape = 'u8[98304]{0}', space=vmem, size = 0x18000, scoped, tag = 'input window, operand 1, single buffered']
    #allocation7 [shape = 's32[1]{0}', space=sflag, size = 0x4, scoped, tag = 'scoped memory for block_forward.1']
    #allocation8 [shape = 'u8[131072]{0}', space=vmem, size = 0x20000, scoped, tag = 'output window, operand 0']
    %8 = vsyncpa [#allocation4], 0
    %s9 = scalar_lea.sflag [#allocation4], 1
    %10 = vsyncpa %s9, 0
    %11 = vsyncpa [#allocation7], 0
    %12 = vsyncpa [#allocation5], 0
    %s13 = scalar_lea.sflag [#allocation5], 1
    %14 = vsyncpa %s13, 0
    loop: start=0, step=1, limit=4
    $region2: #{block_forward.1} parent=1 // loop_pre_header
      _
    $region3: #{block_forward.1} parent=1 // loop_header
      %s16 = sphi 0, %s20
      %p17 = scmp.ge.s32.totalorder %s16, 4
      %s26 = sphi 0, %s28
      %s29 = sphi 0, %s26
      %s30 = sphi 0, %s29
      %s46 = sphi 0, %s30
      %s50 = sphi 0, %s50
      %s52 = sphi 0, %s50
      %s53 = sphi 0, %s52
      %s67 = sphi 0, %s53
      %s71 = sphi 0, %s71
      %s73 = sphi 0, %s71
      %s74 = sphi 0, %s73
      %s88 = sphi 0, %s74
      %s94 = sphi 0, %s96
      %s97 = sphi 0, %s94
      %s98 = sphi 0, %s97
      %s114 = sphi 0, %s98
    $region4: #{block_forward.1} parent=1 // loop_header_branch
      %19 = sbr.rel (%p17) target = $region8
    $region5: #{block_forward.1} parent=1 // loop_body
      %s21 = ssub.s32 %s16, 1
      %s22 = ssub.s32 %s16, 2
      %s23 = sadd.s32 %s16, 1
      %s24 = ssub.s32 %s16, %s23
      %p25 = scmp.eq.s32.totalorder %s24, 0
      %s27 = sadd.s32 %s26, 1
      %s28 = scalar_select %p25, %s26, %s27
      %p31 = pneg %p25
      %p32 = scmp.eq.s32.totalorder %s16, 1
      %p33 = por %p31, %p32
      %p34 = scmp.ne.s32.totalorder %s26, %s29
      %p35 = scmp.eq.s32.totalorder %s16, 0
      %p36 = por %p34, %p35
      %p37 = scmp.ne.s32.totalorder %s26, %s29
      %p38 = scmp.eq.s32.totalorder %s21, 1
      %p39 = por %p37, %p38
      %p40 = scmp.ne.s32.totalorder %s29, %s30
      %p41 = scmp.eq.s32.totalorder %s21, 0
      %p42 = por %p40, %p41
      %p43 = scmp.ne.s32.totalorder %s29, %s30
      %p44 = scmp.eq.s32.totalorder %s22, 1
      %p45 = por %p43, %p44
      %p47 = scmp.ne.s32.totalorder %s30, %s46
      %p48 = scmp.eq.s32.totalorder %s22, 0
      %p49 = por %p47, %p48
      %s51 = sadd.s32 %s50, 1
      %p54 = scmp.eq.s32.totalorder %s16, 1
      %p55 = scmp.ne.s32.totalorder %s50, %s52
      %p56 = scmp.eq.s32.totalorder %s16, 0
      %p57 = por %p55, %p56
      %p58 = scmp.ne.s32.totalorder %s50, %s52
      %p59 = scmp.eq.s32.totalorder %s21, 1
      %p60 = por %p58, %p59
      %p61 = scmp.ne.s32.totalorder %s52, %s53
      %p62 = scmp.eq.s32.totalorder %s21, 0
      %p63 = por %p61, %p62
      %p64 = scmp.ne.s32.totalorder %s52, %s53
      %p65 = scmp.eq.s32.totalorder %s22, 1
      %p66 = por %p64, %p65
      %p68 = scmp.ne.s32.totalorder %s53, %s67
      %p69 = scmp.eq.s32.totalorder %s22, 0
      %p70 = por %p68, %p69
      %s72 = sadd.s32 %s71, 1
      %p75 = scmp.eq.s32.totalorder %s16, 1
      %p76 = scmp.ne.s32.totalorder %s71, %s73
      %p77 = scmp.eq.s32.totalorder %s16, 0
      %p78 = por %p76, %p77
      %p79 = scmp.ne.s32.totalorder %s71, %s73
      %p80 = scmp.eq.s32.totalorder %s21, 1
      %p81 = por %p79, %p80
      %p82 = scmp.ne.s32.totalorder %s73, %s74
      %p83 = scmp.eq.s32.totalorder %s21, 0
      %p84 = por %p82, %p83
      %p85 = scmp.ne.s32.totalorder %s73, %s74
      %p86 = scmp.eq.s32.totalorder %s22, 1
      %p87 = por %p85, %p86
      %p89 = scmp.ne.s32.totalorder %s74, %s88
      %p90 = scmp.eq.s32.totalorder %s22, 0
      %p91 = por %p89, %p90
      %s92 = ssub.s32 %s16, %s23
      %p93 = scmp.eq.s32.totalorder %s92, 0
      %s95 = sadd.s32 %s94, 1
      %s96 = scalar_select %p93, %s94, %s95
      %p99 = pneg %p93
      %p100 = scmp.eq.s32.totalorder %s16, 1
      %p101 = por %p99, %p100
      %p102 = scmp.ne.s32.totalorder %s94, %s97
      %p103 = scmp.eq.s32.totalorder %s16, 0
      %p104 = por %p102, %p103
      %p105 = scmp.ne.s32.totalorder %s94, %s97
      %p106 = scmp.eq.s32.totalorder %s21, 1
      %p107 = por %p105, %p106
      %p108 = scmp.ne.s32.totalorder %s97, %s98
      %p109 = scmp.eq.s32.totalorder %s21, 0
      %p110 = por %p108, %p109
      %p111 = scmp.ne.s32.totalorder %s97, %s98
      %p112 = scmp.eq.s32.totalorder %s22, 1
      %p113 = por %p111, %p112
      %p115 = scmp.ne.s32.totalorder %s98, %s114
      %p116 = scmp.eq.s32.totalorder %s22, 0
      %p117 = por %p115, %p116
      %p118 = scmp.le.s32.totalorder 1, %s16
      %p119 = scmp.lt.s32.totalorder %s16, 3
      %p120 = pnand %p118, %p119
      %p121 = pneg %p120
      // Predicated region
      $region9: #{block_forward.1} parent=5 // pred_check
        _
      $region10: #{block_forward.1} parent=5 // pred_check_branch
        %123 = sbr.rel (%p120) target = $region12
      $region11: #{block_forward.1} parent=5 // pred_region
        %s124 = ssub.s32 %s16, 1
        // Predicated region
        $region13: #{block_forward.1} parent=11 // pred_check
          %p125 = pneg %p63
        $region14: #{block_forward.1} parent=11 // pred_check_branch
          %127 = sbr.rel (%p125) target = $region16
        $region15: #{block_forward.1} parent=11 // pred_region
          %s129 = ssub.s32 3072, 3072
          %130 = vsyncadd [#allocation7], %s129
          %s131 = sshll.u32 [#allocation6], 4
          %s132 = int_to_ptr.vmem [resolvable:$true] %s131
          %137 = dma.hbm_to_vmem [thread:$0]  %s1, 3072, %s132, [#allocation7], 128, 128, 8
        $region16: #{block_forward.1} parent=11 // pred_fallthru
          _
        // Predicated region
        $region17: #{block_forward.1} parent=11 // pred_check
          %p138 = pneg %p84
        $region18: #{block_forward.1} parent=11 // pred_check_branch
          %140 = sbr.rel (%p138) target = $region20
        $region19: #{block_forward.1} parent=11 // pred_region
          _
        $region20: #{block_forward.1} parent=11 // pred_fallthru
          _
      $region12: #{block_forward.1} parent=5 // pred_fallthru
        _
      %p141 = scmp.lt.s32.totalorder %s16, 2
      // Predicated region
      $region21: #{block_forward.1} parent=5 // pred_check
        %p142 = pneg %p141
      $region22: #{block_forward.1} parent=5 // pred_check_branch
        %144 = sbr.rel (%p142) target = $region24
      $region23: #{block_forward.1} parent=5 // pred_region
        // Predicated region
        $region25: #{block_forward.1} parent=23 // pred_check
          %p145 = pneg %p36
        $region26: #{block_forward.1} parent=23 // pred_check_branch
          %147 = sbr.rel (%p145) target = $region28
        $region27: #{block_forward.1} parent=23 // pred_region
          %s148 = sand.u32 %s26, 1
          %s149 = scalar_lea.sflag [#allocation4], %s148
          %s150 = sand.u32 %s26, 1
          %s151 = smul.addr %s150, 64
          %s152 = scalar_lea.vmem [#allocation3], %s151
          %s154 = ssub.s32 1024, 1024
          %155 = vsyncadd %s149, %s154
          %s156 = smul.addr %s16, 8
          %s157 = smul.addr %s156, 128
          %s158 = scalar_lea.hbm %s0, %s157
          %s159 = sshll.u32 %s152, 4
          %s160 = int_to_ptr.vmem [resolvable:$true] %s159
          %165 = dma.hbm_to_vmem [thread:$0]  %s158, 1024, %s160, %s149, 128, 128, 8
        $region28: #{block_forward.1} parent=23 // pred_fallthru
          _
      $region24: #{block_forward.1} parent=5 // pred_fallthru
        _
      %p166 = scmp.le.s32.totalorder 1, %s16
      %p167 = scmp.lt.s32.totalorder %s16, 3
      %p168 = pnand %p166, %p167
      %p169 = pneg %p168
      // Predicated region
      $region29: #{block_forward.1} parent=5 // pred_check
        _
      $region30: #{block_forward.1} parent=5 // pred_check_branch
        %171 = sbr.rel (%p168) target = $region32
      $region31: #{block_forward.1} parent=5 // pred_region
        %s172 = ssub.s32 %s16, 1
        %s173 = sand.u32 %s29, 1
        %s174 = scalar_lea.sflag [#allocation4], %s173
        %s175 = sand.u32 %s29, 1
        %s176 = smul.addr %s175, 64
        %s177 = scalar_lea.vmem [#allocation3], %s176
        // Predicated region
        $region33: #{block_forward.1} parent=31 // pred_check
          %p178 = pneg %p42
        $region34: #{block_forward.1} parent=31 // pred_check_branch
          %180 = sbr.rel (%p178) target = $region36
        $region35: #{block_forward.1} parent=31 // pred_region
          %181 = dma.done %s174, 1024
        $region36: #{block_forward.1} parent=31 // pred_fallthru
          _
        // Predicated region
        $region37: #{block_forward.1} parent=31 // pred_check
          %p182 = pneg %p63
        $region38: #{block_forward.1} parent=31 // pred_check_branch
          %184 = sbr.rel (%p182) target = $region40
        $region39: #{block_forward.1} parent=31 // pred_region
          %185 = dma.done [#allocation7], 3072
        $region40: #{block_forward.1} parent=31 // pred_fallthru
          _
        %s186 = sand.u32 %s29, 1
        %s187 = scalar_lea.sflag [#allocation4], %s186
        %s188 = sand.u32 %s29, 1
        %s189 = smul.addr %s188, 64
        %s190 = scalar_lea.vmem [#allocation3], %s189
        %p191 = pneg %p42
        %p192 = pneg %p39
        %p193 = pneg %p63
        %p194 = pneg %p60
        %p195 = pneg %p84
        %p196 = pneg %p81
        %p197 = pneg %p110
        %p198 = pneg %p107
        %s199 = sand.u32 %s97, 1
        %s200 = scalar_lea.sflag [#allocation5], %s199
        %s201 = sand.u32 %s97, 1
        %s202 = smul.addr %s201, 128
        %s203 = scalar_lea.vmem [#allocation8], %s202
        %vm204 = vcmask 516096
        %205 = vst.msk [vmem:[#allocation2] sm:$0x1] %vm204, 0.0
        %206 = vst.msk [vmem:[#allocation2 + $0x1f] sm:$0x1] %vm204, 0.0
        %v207 = vld [vmem:[%s177] sm:$0xff]
        %v208 = vld [vmem:[%s177 + $0x8] sm:$0xff]
        %211 = vrot.lane.b32.xlu0 %v207, 64
        %v212 = vpop.permute.xlu0 %211
        %213 = vrot.lane.b32.xlu0 %v208, 64
        %v214 = vpop.permute.xlu0 %213
        %vm217 = vcmask 654848
        %218 = vst.msk [vmem:[#allocation2] sm:$0xff] %vm217, %v212
        %219 = vst.msk [vmem:[#allocation2 + $0x10] sm:$0xff] %vm217, %v214
        %vm220 = vcmask 1040384
        %v221 = vrot.slane %v207, 7
        %v222 = vrot.slane %v208, 7
        %v223 = vsel %vm220, %v221, %v222
        %vm226 = vcmask 130049
        %227 = vst.msk [vmem:[#allocation2] sm:$0xfe] %vm226, %v221
        %vm228 = vcmask 130048
        %229 = vst.msk [vmem:[#allocation2 + $0x10] sm:$0xff] %vm228, %v223
        %vm230 = vcmask 1046528
        %v231 = vrot.slane %v207, 1
        %v232 = vrot.slane %v208, 1
        %v233 = vsel %vm230, %v231, %v232
        %236 = vst.msk [vmem:[#allocation2 + $0x8] sm:$0xff] %vm228, %v233
        %vm237 = vcmask 129024
        %238 = vst.msk [vmem:[#allocation2 + $0x18] sm:$0x7f] %vm237, %v232
        %s239 = scalar_lea.vmem %s177, 16 [#allocation3]
        %v240 = vld [vmem:[%s239] sm:$0xff]
        %v241 = vld [vmem:[%s239 + $0x8] sm:$0xff]
        %244 = vrot.lane.b32.xlu0 %v240, 80
        %v245 = vpop.permute.xlu0 %244
        %246 = vrot.lane.b32.xlu0 %v241, 80
        %v247 = vpop.permute.xlu0 %246
        %vm250 = vcmask 786048
        %251 = vst.msk [vmem:[#allocation2] sm:$0xff] %vm250, %v245
        %252 = vst.msk [vmem:[#allocation2 + $0x10] sm:$0xff] %vm250, %v247
        %v253 = vrot.slane %v240, 7
        %v254 = vrot.slane %v241, 7
        %v255 = vsel %vm220, %v253, %v254
        %256 = vrot.lane.b32.xlu0 %v253, 16
        %v257 = vpop.permute.xlu0 %256
        %258 = vrot.lane.b32.xlu0 %v255, 16
        %v259 = vpop.permute.xlu0 %258
        %vm262 = vcmask 261249
        %263 = vst.msk [vmem:[#allocation2] sm:$0xfe] %vm262, %v257
        %vm264 = vcmask 261248
        %265 = vst.msk [vmem:[#allocation2 + $0x10] sm:$0xff] %vm264, %v259
        %v266 = vrot.slane %v240, 1
        %v267 = vrot.slane %v241, 1
        %v268 = vsel %vm230, %v266, %v267
        %269 = vrot.lane.b32.xlu0 %v268, 16
        %v270 = vpop.permute.xlu0 %269
        %271 = vrot.lane.b32.xlu0 %v267, 16
        %v272 = vpop.permute.xlu0 %271
        %275 = vst.msk [vmem:[#allocation2 + $0x8] sm:$0xff] %vm264, %v270
        %vm276 = vcmask 260224
        %277 = vst.msk [vmem:[#allocation2 + $0x18] sm:$0x7f] %vm276, %v272
        %s278 = scalar_lea.vmem %s177, 32 [#allocation3]
        %v279 = vld [vmem:[%s278] sm:$0xff]
        %v280 = vld [vmem:[%s278 + $0x8] sm:$0xff]
        %283 = vrot.lane.b32.xlu0 %v279, 96
        %v284 = vpop.permute.xlu0 %283
        %285 = vrot.lane.b32.xlu0 %v280, 96
        %v286 = vpop.permute.xlu0 %285
        %vm289 = vcmask 917248
        %290 = vst.msk [vmem:[#allocation2] sm:$0xff] %vm289, %v284
        %291 = vst.msk [vmem:[#allocation2 + $0x10] sm:$0xff] %vm289, %v286
        %v292 = vrot.slane %v279, 7
        %v293 = vrot.slane %v280, 7
        %v294 = vsel %vm220, %v292, %v293
        %295 = vrot.lane.b32.xlu0 %v292, 32
        %v296 = vpop.permute.xlu0 %295
        %297 = vrot.lane.b32.xlu0 %v294, 32
        %v298 = vpop.permute.xlu0 %297
        %vm301 = vcmask 392449
        %302 = vst.msk [vmem:[#allocation2] sm:$0xfe] %vm301, %v296
        %vm303 = vcmask 392448
        %304 = vst.msk [vmem:[#allocation2 + $0x10] sm:$0xff] %vm303, %v298
        %v305 = vrot.slane %v279, 1
        %v306 = vrot.slane %v280, 1
        %v307 = vsel %vm230, %v305, %v306
        %308 = vrot.lane.b32.xlu0 %v307, 32
        %v309 = vpop.permute.xlu0 %308
        %310 = vrot.lane.b32.xlu0 %v306, 32
        %v311 = vpop.permute.xlu0 %310
        %314 = vst.msk [vmem:[#allocation2 + $0x8] sm:$0xff] %vm303, %v309
        %vm315 = vcmask 391424
        %316 = vst.msk [vmem:[#allocation2 + $0x18] sm:$0x7f] %vm315, %v311
        %s317 = scalar_lea.vmem %s177, 48 [#allocation3]
        %v318 = vld [vmem:[%s317] sm:$0xff]
        %v319 = vld [vmem:[%s317 + $0x8] sm:$0xff]
        %322 = vrot.lane.b32.xlu0 %v318, 112
        %v323 = vpop.permute.xlu0 %322
        %324 = vrot.lane.b32.xlu0 %v319, 112
        %v325 = vpop.permute.xlu0 %324
        %vm328 = vcmask 1048448
        %329 = vst.msk [vmem:[#allocation2] sm:$0xff] %vm328, %v323
        %330 = vst.msk [vmem:[#allocation2 + $0x10] sm:$0xff] %vm328, %v325
        %v331 = vrot.slane %v318, 7
        %v332 = vrot.slane %v319, 7
        %v333 = vsel %vm220, %v331, %v332
        %334 = vrot.lane.b32.xlu0 %v331, 48
        %v335 = vpop.permute.xlu0 %334
        %336 = vrot.lane.b32.xlu0 %v333, 48
        %v337 = vpop.permute.xlu0 %336
        %vm340 = vcmask 523649
        %341 = vst.msk [vmem:[#allocation2] sm:$0xfe] %vm340, %v335
        %vm342 = vcmask 523648
        %343 = vst.msk [vmem:[#allocation2 + $0x10] sm:$0xff] %vm342, %v337
        %v344 = vrot.slane %v318, 1
        %v345 = vrot.slane %v319, 1
        %v346 = vsel %vm230, %v344, %v345
        %347 = vrot.lane.b32.xlu0 %v346, 48
        %v348 = vpop.permute.xlu0 %347
        %349 = vrot.lane.b32.xlu0 %v345, 48
        %v350 = vpop.permute.xlu0 %349
        %353 = vst.msk [vmem:[#allocation2 + $0x8] sm:$0xff] %vm342, %v348
        %vm354 = vcmask 522624
        %355 = vst.msk [vmem:[#allocation2 + $0x18] sm:$0x7f] %vm354, %v350
        %v356 = vld [vmem:[#allocation2] sm:$0xff]
        %v357 = vld [vmem:[#allocation2 + $0x8] sm:$0xff]
        %v358 = vld [vmem:[#allocation2 + $0x10] sm:$0xff]
        %v359 = vld [vmem:[#allocation2 + $0x18] sm:$0xff]
        %v360 = vld [vmem:[#allocation6] sm:$0xff]
        %v361 = vld [vmem:[#allocation6 + $0x8] sm:$0xff]
        %v362 = vld [vmem:[#allocation6 + $0x10] sm:$0xff]
        %v363 = vld [vmem:[#allocation6 + $0x18] sm:$0xff]
        %v364 = vld [vmem:[#allocation6 + $0x20] sm:$0xff]
        %v365 = vld [vmem:[#allocation6 + $0x28] sm:$0xff]
        %v366 = vld [vmem:[#allocation6 + $0x30] sm:$0xff]
        %v367 = vld [vmem:[#allocation6 + $0x38] sm:$0xff]
        %v368 = vld [vmem:[#allocation6 + $0x40] sm:$0xff]
        %v369 = vld [vmem:[#allocation6 + $0x48] sm:$0xff]
        %v370 = vld [vmem:[#allocation6 + $0x50] sm:$0xff]
        %v371 = vld [vmem:[#allocation6 + $0x58] sm:$0xff]
        %v372 = vld [vmem:[#allocation6 + $0x60] sm:$0xff]
        %v373 = vld [vmem:[#allocation6 + $0x68] sm:$0xff]
        %v374 = vld [vmem:[#allocation6 + $0x70] sm:$0xff]
        %v375 = vld [vmem:[#allocation6 + $0x78] sm:$0xff]
        %v376 = vld [vmem:[#allocation6 + $0x80] sm:$0xff]
        %v377 = vld [vmem:[#allocation6 + $0x88] sm:$0xff]
        %v378 = vld [vmem:[#allocation6 + $0x90] sm:$0xff]
        %v379 = vld [vmem:[#allocation6 + $0x98] sm:$0xff]
        %v380 = vld [vmem:[#allocation6 + $0xa0] sm:$0xff]
        %v381 = vld [vmem:[#allocation6 + $0xa8] sm:$0xff]
        %v382 = vld [vmem:[#allocation6 + $0xb0] sm:$0xff]
        %v383 = vld [vmem:[#allocation6 + $0xb8] sm:$0xff]
        %v384 = vld [vmem:[%s2] sm:$0x1]
        %v386 = vlaneseq
        %v387 = vshrl.u32 %v386, 7
        %v388 = vsub.s32 0, %v387
        %v389 = vrot.slane %v384, %v388
        %vm391 = vcmask 523264
        %v393 = vsel %vm391, %v357, 0
        %v396 = vsel %vm391, %v359, 0
        %398 = vmatprep.subr.mxu0 0.0
        %399 = vmatpush1.msra.mxu0 %v360
        %400 = vmatprep.subr.mxu0 0.0
        %401 = vmatpush1.msra.mxu0 %v361
        %402 = vmatprep.subr.mxu0 0.0
        %403 = vmatpush1.msra.mxu0 %v362
        %404 = vmatprep.subr.mxu0 0.0
        %405 = vmatpush1.msra.mxu0 %v363
        %406 = vmatprep.subr.mxu0 0.0
        %407 = vmatpush1.msra.mxu0 %v364
        %408 = vmatprep.subr.mxu0 0.0
        %409 = vmatpush1.msra.mxu0 %v365
        %410 = vmatprep.subr.mxu0 0.0
        %411 = vmatpush1.msra.mxu0 %v366
        %412 = vmatprep.subr.mxu0 0.0
        %413 = vmatpush1.msra.mxu0 %v367
        %414 = vmatprep.subr.mxu0 0.0
        %415 = vmatpush1.msra.mxu0 %v368
        %416 = vmatprep.subr.mxu0 0.0
        %417 = vmatpush1.msra.mxu0 %v369
        %418 = vmatprep.subr.mxu0 0.0
        %419 = vmatpush1.msra.mxu0 %v370
        %420 = vmatprep.subr.mxu0 0.0
        %421 = vmatpush1.msra.mxu0 %v371
        %422 = vmatprep.subr.mxu0 0.0
        %423 = vmatpush1.msra.mxu0 %v372
        %424 = vmatprep.subr.mxu0 0.0
        %425 = vmatpush1.msra.mxu0 %v373
        %426 = vmatprep.subr.mxu0 0.0
        %427 = vmatpush1.msra.mxu0 %v374
        %428 = vmatprep.subr.mxu0 0.0
        %429 = vmatpush1.msra.mxu0 %v375
        %430 = vmatprep.subr.mxu0 0.0
        %431 = vmatpush1.msra.mxu0 %v376
        %432 = vmatprep.subr.mxu0 0.0
        %433 = vmatpush1.msra.mxu0 %v377
        %434 = vmatprep.subr.mxu0 0.0
        %435 = vmatpush1.msra.mxu0 %v378
        %436 = vmatprep.subr.mxu0 0.0
        %437 = vmatpush1.msra.mxu0 %v379
        %438 = vmatprep.subr.mxu0 0.0
        %439 = vmatpush1.msra.mxu0 %v380
        %440 = vmatprep.subr.mxu0 0.0
        %441 = vmatpush1.msra.mxu0 %v381
        %442 = vmatprep.subr.mxu0 0.0
        %443 = vmatpush1.msra.mxu0 %v382
        %444 = vmatprep.subr.mxu0 0.0
        %445 = vmatpush1.msra.mxu0 %v383
        %446 = vmatprep.subr.mxu0 0.0
        %447 = vmatpush1.msra.mxu0 0.0
        %448 = vmatprep.subr.mxu0 0.0
        %449 = vmatpush1.msra.mxu0 0.0
        %450 = vmatprep.subr.mxu0 0.0
        %451 = vmatpush1.msra.mxu0 0.0
        %452 = vmatprep.subr.mxu0 0.0
        %453 = vmatpush1.msra.mxu0 0.0
        %454 = vmatprep.subr.mxu0 0.0
        %455 = vmatpush1.msra.mxu0 0.0
        %456 = vmatprep.subr.mxu0 0.0
        %457 = vmatpush1.msra.mxu0 0.0
        %458 = vmatprep.subr.mxu0 0.0
        %459 = vmatpush1.msra.mxu0 0.0
        %460 = vmatprep.subr.mxu0 0.0
        %461 = vmatpush1.msra.mxu0 0.0
        %462 = vmatprep.mubr.f32.mxu0 %v393
        %463 = vmatmul.mubr.f32.gmra.mrb[0].mxu0 %v356
        %v464 = vpop.f32.mrb[0].mxu0
        %v465 = vadd.f32 %v389, %v464
        %v466 = vpop.f32.mrb[0].mxu0
        %467 = vmatprep.mubr.f32.mxu0 %v396
        %468 = vmatmul.mubr.f32.gmra.mrb[0].mxu0 %v358
        %v469 = vpop.f32.mrb[0].mxu0
        %v470 = vadd.f32 %v389, %v469
        %v471 = vpop.f32.mrb[0].mxu0
        %472 = vdwg.mxu0
        %v473 = vmax.f32 %v465, 0.0
        %v474 = vmax.f32 %v470, 0.0
        %475 = vst.msk [vmem:[%s203] sm:$0xff] %vm228, %v473
        %476 = vst.msk [vmem:[%s203 + $0x8] sm:$0xff] %vm228, %v474
        %479 = vrot.lane.b32.xlu0 %v473, 112
        %v480 = vpop.permute.xlu0 %479
        %481 = vrot.lane.b32.xlu0 %v474, 112
        %v482 = vpop.permute.xlu0 %481
        %s485 = scalar_lea.vmem %s203, 16 [#allocation8]
        %486 = vst.msk [vmem:[%s485] sm:$0xff] %vm228, %v480
        %487 = vst.msk [vmem:[%s485 + $0x8] sm:$0xff] %vm228, %v482
        %488 = vrot.lane.b32.xlu0 %v473, 96
        %v489 = vpop.permute.xlu0 %488
        %490 = vrot.lane.b32.xlu0 %v474, 96
        %v491 = vpop.permute.xlu0 %490
        %s494 = scalar_lea.vmem %s203, 32 [#allocation8]
        %495 = vst.msk [vmem:[%s494] sm:$0xff] %vm228, %v489
        %496 = vst.msk [vmem:[%s494 + $0x8] sm:$0xff] %vm228, %v491
        %497 = vrot.lane.b32.xlu0 %v473, 80
        %v498 = vpop.permute.xlu0 %497
        %499 = vrot.lane.b32.xlu0 %v474, 80
        %v500 = vpop.permute.xlu0 %499
        %s503 = scalar_lea.vmem %s203, 48 [#allocation8]
        %504 = vst.msk [vmem:[%s503] sm:$0xff] %vm228, %v498
        %505 = vst.msk [vmem:[%s503 + $0x8] sm:$0xff] %vm228, %v500
        %506 = vrot.lane.b32.xlu0 %v473, 64
        %v507 = vpop.permute.xlu0 %506
        %508 = vrot.lane.b32.xlu0 %v474, 64
        %v509 = vpop.permute.xlu0 %508
        %s512 = scalar_lea.vmem %s203, 64 [#allocation8]
        %513 = vst.msk [vmem:[%s512] sm:$0xff] %vm228, %v507
        %514 = vst.msk [vmem:[%s512 + $0x8] sm:$0xff] %vm228, %v509
        %515 = vrot.lane.b32.xlu0 %v473, 48
        %v516 = vpop.permute.xlu0 %515
        %517 = vrot.lane.b32.xlu0 %v474, 48
        %v518 = vpop.permute.xlu0 %517
        %s521 = scalar_lea.vmem %s203, 80 [#allocation8]
        %522 = vst.msk [vmem:[%s521] sm:$0xff] %vm228, %v516
        %523 = vst.msk [vmem:[%s521 + $0x8] sm:$0xff] %vm228, %v518
        %524 = vrot.lane.b32.xlu0 %v473, 32
        %v525 = vpop.permute.xlu0 %524
        %526 = vrot.lane.b32.xlu0 %v474, 32
        %v527 = vpop.permute.xlu0 %526
        %s530 = scalar_lea.vmem %s203, 96 [#allocation8]
        %531 = vst.msk [vmem:[%s530] sm:$0xff] %vm228, %v525
        %532 = vst.msk [vmem:[%s530 + $0x8] sm:$0xff] %vm228, %v527
        %533 = vrot.lane.b32.xlu0 %v473, 16
        %v534 = vpop.permute.xlu0 %533
        %535 = vrot.lane.b32.xlu0 %v474, 16
        %v536 = vpop.permute.xlu0 %535
        %s539 = scalar_lea.vmem %s203, 112 [#allocation8]
        %540 = vst.msk [vmem:[%s539] sm:$0xff] %vm228, %v534
        %541 = vst.msk [vmem:[%s539 + $0x8] sm:$0xff] %vm228, %v536
        %s542 = sand.u32 %s97, 1
        %s543 = scalar_lea.sflag [#allocation5], %s542
        %s544 = sand.u32 %s97, 1
        %s545 = smul.addr %s544, 128
        %s546 = scalar_lea.vmem [#allocation8], %s545
        // Predicated region
        $region41: #{block_forward.1} parent=31 // pred_check
          %p547 = pneg %p107
        $region42: #{block_forward.1} parent=31 // pred_check_branch
          %549 = sbr.rel (%p547) target = $region44
        $region43: #{block_forward.1} parent=31 // pred_region
          %s551 = ssub.s32 2048, 2048
          %552 = vsyncadd %s543, %s551
          %s553 = smul.addr %s21, 16
          %s554 = smul.addr %s553, 128
          %s555 = scalar_lea.hbm %s3, %s554
          %s556 = sshll.u32 %s546, 4
          %s557 = int_to_ptr.vmem [resolvable:$true] %s556
          %562 = dma.vmem_to_hbm [thread:$0]  %s557, 2048, %s555, %s543, 128, 128, 8
        $region44: #{block_forward.1} parent=31 // pred_fallthru
          _
      $region32: #{block_forward.1} parent=5 // pred_fallthru
        _
      %p563 = scmp.le.s32.totalorder 2, %s16
      // Predicated region
      $region45: #{block_forward.1} parent=5 // pred_check
        %p564 = pneg %p563
      $region46: #{block_forward.1} parent=5 // pred_check_branch
        %566 = sbr.rel (%p564) target = $region48
      $region47: #{block_forward.1} parent=5 // pred_region
        %s567 = ssub.s32 %s16, 2
        // Predicated region
        $region49: #{block_forward.1} parent=47 // pred_check
          %p568 = pneg %p113
        $region50: #{block_forward.1} parent=47 // pred_check_branch
          %570 = sbr.rel (%p568) target = $region52
        $region51: #{block_forward.1} parent=47 // pred_region
          %s571 = sand.u32 %s98, 1
          %s572 = scalar_lea.sflag [#allocation5], %s571
          %s573 = sand.u32 %s98, 1
          %s574 = smul.addr %s573, 128
          %s575 = scalar_lea.vmem [#allocation8], %s574
          %576 = dma.done %s572, 2048
        $region52: #{block_forward.1} parent=47 // pred_fallthru
          _
      $region48: #{block_forward.1} parent=5 // pred_fallthru
        _
    $region6: #{block_forward.1} parent=1 // loop_footer
      %s20 = sadd.s32 1, %s16
    $region7: #{block_forward.1} parent=1 // loop_footer_branch
      %15 = sbr.rel target = $region3
    $region8: #{block_forward.1} parent=1 // loop_exit
      _
    %577 = vsyncpa [#allocation4], 1
    %s578 = scalar_lea.sflag [#allocation4], 1
    %579 = vsyncpa %s578, 1
    %580 = vsyncpa [#allocation7], 1
    %581 = vsyncpa [#allocation5], 1
    %s582 = scalar_lea.sflag [#allocation5], 1
    %583 = vsyncpa %s582, 1

</llo_original>
